<compile_context>
chip_gen: v5e
topology: v5e:2x2
jax: 0.10.0
libtpu: 0.0.40
codegen_flags: <defaults>
</compile_context>

<pallas_src>
import jax
import jax.numpy as jnp
from jax.experimental import pallas as pl

# ---------------- sizes ----------------
N = 64                    # num nodes
K = 8                     # max_freqs
DIM_IN = 16               # cfg.share.dim_in
DIM_EMB = 32              # final node embedding size
DIM_PE = 8                # dim_pe
DIM_H = 2 * DIM_PE        # 16  (linear_A output per frequency)
DIM_X = DIM_EMB - DIM_PE  # 24  (linear_x output)

# Packed-slab row offsets (8-aligned so in-kernel sublane slices are free).
_A0_R, _A1_R, _BA_R = 0, K, 2 * K                     # slabA : [24, 128]
_SLABA_ROWS = 24
_W1_R, _WM_R, _B1_R = 0, K * DIM_H, K * DIM_H + K     # slab64: [144, 64]
_SLAB64_ROWS = 144
_WPP_R, _WX_R, _BP_R, _BX_R = 0, K * DIM_PE, 80, 88   # slab32: [96, 32]
_SLAB32_ROWS = 96


def wlappe_kernel(eigvec_ref, eigval_ref, x_ref,
                  slabA_ref, slab64_ref, slab32_ref, out_ref):
    vecs = eigvec_ref[...]                         # [N, K]  (may hold NaN pad)
    vals = eigval_ref[...]                         # [N, K]

    # Vectorized NaN handling on the full tiles (done once, not per frequency).
    nan_vec = jnp.isnan(vecs)
    vecs_c = jnp.where(nan_vec, 0.0, vecs)
    vals_c = jnp.where(jnp.isnan(vals), 0.0, vals)
    maskf = jnp.where(nan_vec, 0.0, 1.0)           # (~isnan(EigVecs)).float()

    # Static sublane slices of the packed weight slabs (free views).
    A0 = slabA_ref[_A0_R:_A0_R + K, :]             # [8, 128]
    A1 = slabA_ref[_A1_R:_A1_R + K, :]             # [8, 128]
    bA = slabA_ref[_BA_R:_BA_R + 1, :]             # [1, 128]
    W1 = slab64_ref[_W1_R:_W1_R + K * DIM_H, :]    # [128, 64] block-diag
    Wm = slab64_ref[_WM_R:_WM_R + K, :]            # [8, 64]  mask expander
    b1 = slab64_ref[_B1_R:_B1_R + 1, :]            # [1, 64]
    Wpp = slab32_ref[_WPP_R:_WPP_R + K * DIM_PE, :]  # [64, 32] freq-sum+post+place
    Wx = slab32_ref[_WX_R:_WX_R + DIM_IN, :]       # [16, 32] linear_x (placed)
    bp = slab32_ref[_BP_R:_BP_R + 1, :]            # [1, 32]
    bx = slab32_ref[_BX_R:_BX_R + 1, :]            # [1, 32]

    # linear_A on the (eigvec, eigval) channels, block-expanded over K freqs.
    z0 = (jnp.dot(vecs_c, A0, preferred_element_type=jnp.float32)
          + jnp.dot(vals_c, A1, preferred_element_type=jnp.float32)
          + bA)                                                  # [N, 128]
    # pe_encoder: ReLU -> Linear(2*dim_pe, dim_pe) (block-diag) -> ReLU
    z1 = jnp.dot(jnp.maximum(z0, 0.0), W1,
                 preferred_element_type=jnp.float32) + b1        # [N, 64]
    # Zero padded frequencies (eigvec-NaN mask) after the second ReLU.
    z2 = jnp.maximum(z1, 0.0) * jnp.dot(maskf, Wm,
                                        preferred_element_type=jnp.float32)
    # Sum over frequencies + post_mlp Linear + placement into cols [24:32),
    # all folded into one matmul; ReLU of the zero-padded left half stays zero.
    pe_full = jnp.maximum(
        jnp.dot(z2, Wpp, preferred_element_type=jnp.float32) + bp, 0.0)  # [N,32]
    # linear_x placed into cols [0:24); single full-width store, no concat.
    out_ref[...] = pe_full + jnp.dot(x_ref[...], Wx,
                                     preferred_element_type=jnp.float32) + bx


def pack_params(params):
    """Fold the 8 small weight/bias tensors into 3 pre-padded VMEM slabs."""
    wA, bA = params["wA"], params["bA"][0]          # [2,16], [16]
    w1, b1 = params["w1"], params["b1"][0]          # [16,8], [8]
    wpost, bpost = params["wpost"], params["bpost"][0]  # [8,8], [8]
    wx, bx = params["wx"], params["bx"][0]          # [16,24], [24]

    eyeK = jnp.eye(K, dtype=jnp.float32)
    A0 = jnp.kron(eyeK, wA[0:1, :])                 # [K, K*2H] = [8, 128]
    A1 = jnp.kron(eyeK, wA[1:2, :])                 # [8, 128]
    bA_t = jnp.tile(bA, K)                          # [128]
    W1blk = jnp.kron(eyeK, w1)                      # [128, 64] block-diagonal
    b1_t = jnp.tile(b1, K)                          # [64]
    Wmask = jnp.kron(eyeK, jnp.ones((1, DIM_PE), jnp.float32))   # [8, 64]
    S = jnp.kron(jnp.ones((K, 1), jnp.float32),
                 jnp.eye(DIM_PE, dtype=jnp.float32))             # [64, 8] reducer
    WpostS = S @ wpost                                           # [64, 8]

    WpostPlace = (jnp.zeros((K * DIM_PE, DIM_EMB), jnp.float32)
                  .at[:, DIM_X:].set(WpostS))       # place PE in cols 24:32
    Wx_pad = (jnp.zeros((DIM_IN, DIM_EMB), jnp.float32)
              .at[:, :DIM_X].set(wx))               # place h in cols 0:24
    bp_pad = jnp.zeros((DIM_EMB,), jnp.float32).at[DIM_X:].set(bpost)
    bx_pad = jnp.zeros((DIM_EMB,), jnp.float32).at[:DIM_X].set(bx)

    slabA = (jnp.zeros((_SLABA_ROWS, K * DIM_H), jnp.float32)
             .at[_A0_R:_A0_R + K].set(A0)
             .at[_A1_R:_A1_R + K].set(A1)
             .at[_BA_R].set(bA_t))
    slab64 = (jnp.zeros((_SLAB64_ROWS, K * DIM_PE), jnp.float32)
              .at[_W1_R:_W1_R + K * DIM_H].set(W1blk)
              .at[_WM_R:_WM_R + K].set(Wmask)
              .at[_B1_R].set(b1_t))
    slab32 = (jnp.zeros((_SLAB32_ROWS, DIM_EMB), jnp.float32)
              .at[_WPP_R:_WPP_R + K * DIM_PE].set(WpostPlace)
              .at[_WX_R:_WX_R + DIM_IN].set(Wx_pad)
              .at[_BP_R].set(bp_pad)
              .at[_BX_R].set(bx_pad))
    return slabA, slab64, slab32


@jax.jit
def wlappe_forward(eigvecs, eigvals, x, slabA, slab64, slab32):
    # Whole problem fits in VMEM -> no grid, full-array blocks, one kernel step.
    return pl.pallas_call(
        wlappe_kernel,
        out_shape=jax.ShapeDtypeStruct((eigvecs.shape[0], DIM_EMB), jnp.float32),
    )(eigvecs, eigvals, x, slabA, slab64, slab32)


def reference_forward(eigvecs, eigvals, x, params):
    pos = jnp.stack([eigvecs, eigvals], axis=2)                 # [N, K, 2]
    mask = jnp.isnan(pos)
    pos = jnp.where(mask, 0.0, pos)
    z = pos @ params["wA"] + params["bA"][0]
    z = jax.nn.relu(z)
    z = z @ params["w1"] + params["b1"][0]
    z = jax.nn.relu(z)
    z = z * (~mask[:, :, 0:1]).astype(jnp.float32)
    pe = z.sum(1)
    pe = jax.nn.relu(pe @ params["wpost"] + params["bpost"][0])
    h = x @ params["wx"] + params["bx"][0]
    return jnp.concatenate([h, pe], axis=1)


if __name__ == "__main__":
    key = jax.random.PRNGKey(0)
    keys = jax.random.split(key, 12)

    # Synthetic positional-encoding inputs (as produced by add_eig):
    # EigVals is per-graph eigenvalues repeated per node ([N,K,1] squeezed to
    # [N,K] on the host); EigVecs is per-node.
    evals = jnp.sort(jax.random.uniform(keys[0], (K,), jnp.float32))
    eigvals = jnp.tile(evals[None, :], (N, 1))                  # [N, K]
    eigvecs = jax.random.normal(keys[1], (N, K), jnp.float32)   # [N, K]
    # NaN padding in the last two frequency slots to exercise the mask.
    pad = jnp.full((N, 2), jnp.nan, jnp.float32)
    eigvecs = eigvecs.at[:, K - 2:].set(pad)
    eigvals = eigvals.at[:, K - 2:].set(pad)

    x = jax.random.normal(keys[2], (N, DIM_IN), jnp.float32)

    def init_lin(kw, kb, din, dout):
        bound = 1.0 / jnp.sqrt(jnp.float32(din))
        w = jax.random.uniform(kw, (din, dout), jnp.float32, -bound, bound)
        b = jax.random.uniform(kb, (1, dout), jnp.float32, -bound, bound)
        return w, b

    wA, bA = init_lin(keys[3], keys[4], 2, DIM_H)               # linear_A
    w1, b1 = init_lin(keys[5], keys[6], DIM_H, DIM_PE)          # pe_encoder Linear
    wpost, bpost = init_lin(keys[7], keys[8], DIM_PE, DIM_PE)   # post_mlp
    wx, bx = init_lin(keys[9], keys[10], DIM_IN, DIM_X)         # linear_x

    params = dict(wA=wA, bA=bA, w1=w1, b1=b1,
                  wpost=wpost, bpost=bpost, wx=wx, bx=bx)
    slabA, slab64, slab32 = pack_params(params)

    out = wlappe_forward(eigvecs, eigvals, x, slabA, slab64, slab32)
    out = jax.block_until_ready(out)

    ref = reference_forward(eigvecs, eigvals, x, params)
    assert out.shape == (N, DIM_EMB)
    assert jnp.allclose(out, ref, atol=5e-5, rtol=5e-5), "mismatch vs reference"
    print("KERNEL_OK")
</pallas_src>

<mosaic_0001>
module attributes {stable_mosaic.version = 11 : i64} {
  func.func @wlappe_kernel(%arg0: memref<64x8xf32, #tpu.memory_space<vmem>>, %arg1: memref<64x8xf32, #tpu.memory_space<vmem>>, %arg2: memref<64x16xf32, #tpu.memory_space<vmem>>, %arg3: memref<24x128xf32, #tpu.memory_space<vmem>>, %arg4: memref<144x64xf32, #tpu.memory_space<vmem>>, %arg5: memref<96x32xf32, #tpu.memory_space<vmem>>, %arg6: memref<64x32xf32, #tpu.memory_space<vmem>>) attributes {dimension_semantics = [], scalar_prefetch = 0 : i64, scratch_operands = 0 : i64, tpu.core_type = #tpu.core_type<tc>} {
    %c0 = arith.constant 0 : index
    %c0_0 = arith.constant 0 : index
    %0 = vector.load %arg0[%c0, %c0_0] : memref<64x8xf32, #tpu.memory_space<vmem>>, vector<64x8xf32>
    %c0_1 = arith.constant 0 : index
    %c0_2 = arith.constant 0 : index
    %1 = vector.load %arg1[%c0_1, %c0_2] : memref<64x8xf32, #tpu.memory_space<vmem>>, vector<64x8xf32>
    %2 = arith.cmpf one, %0, %0 : vector<64x8xf32>
    %cst = arith.constant 0.000000e+00 : f32
    %3 = vector.broadcast %cst : f32 to vector<64x8xf32>
    %4 = arith.select %2, %3, %0 : vector<64x8xi1>, vector<64x8xf32>
    %5 = arith.cmpf one, %1, %1 : vector<64x8xf32>
    %cst_3 = arith.constant 0.000000e+00 : f32
    %6 = vector.broadcast %cst_3 : f32 to vector<64x8xf32>
    %7 = arith.select %5, %6, %1 : vector<64x8xi1>, vector<64x8xf32>
    %cst_4 = arith.constant 0.000000e+00 : f32
    %cst_5 = arith.constant 1.000000e+00 : f32
    %8 = vector.broadcast %cst_4 : f32 to vector<64x8xf32>
    %9 = vector.broadcast %cst_5 : f32 to vector<64x8xf32>
    %10 = arith.select %2, %8, %9 : vector<64x8xi1>, vector<64x8xf32>
    %c0_6 = arith.constant 0 : index
    %c0_7 = arith.constant 0 : index
    %11 = vector.load %arg3[%c0_6, %c0_7] : memref<24x128xf32, #tpu.memory_space<vmem>>, vector<8x128xf32>
    %c8 = arith.constant 8 : index
    %c0_8 = arith.constant 0 : index
    %12 = vector.load %arg3[%c8, %c0_8] : memref<24x128xf32, #tpu.memory_space<vmem>>, vector<8x128xf32>
    %c16 = arith.constant 16 : index
    %c0_9 = arith.constant 0 : index
    %13 = vector.load %arg3[%c16, %c0_9] : memref<24x128xf32, #tpu.memory_space<vmem>>, vector<1x128xf32>
    %c0_10 = arith.constant 0 : index
    %c0_11 = arith.constant 0 : index
    %14 = vector.load %arg4[%c0_10, %c0_11] : memref<144x64xf32, #tpu.memory_space<vmem>>, vector<128x64xf32>
    %c128 = arith.constant 128 : index
    %c0_12 = arith.constant 0 : index
    %15 = vector.load %arg4[%c128, %c0_12] : memref<144x64xf32, #tpu.memory_space<vmem>>, vector<8x64xf32>
    %c136 = arith.constant 136 : index
    %c0_13 = arith.constant 0 : index
    %16 = vector.load %arg4[%c136, %c0_13] : memref<144x64xf32, #tpu.memory_space<vmem>>, vector<1x64xf32>
    %c0_14 = arith.constant 0 : index
    %c0_15 = arith.constant 0 : index
    %17 = vector.load %arg5[%c0_14, %c0_15] : memref<96x32xf32, #tpu.memory_space<vmem>>, vector<64x32xf32>
    %c64 = arith.constant 64 : index
    %c0_16 = arith.constant 0 : index
    %18 = vector.load %arg5[%c64, %c0_16] : memref<96x32xf32, #tpu.memory_space<vmem>>, vector<16x32xf32>
    %c80 = arith.constant 80 : index
    %c0_17 = arith.constant 0 : index
    %19 = vector.load %arg5[%c80, %c0_17] : memref<96x32xf32, #tpu.memory_space<vmem>>, vector<1x32xf32>
    %c88 = arith.constant 88 : index
    %c0_18 = arith.constant 0 : index
    %20 = vector.load %arg5[%c88, %c0_18] : memref<96x32xf32, #tpu.memory_space<vmem>>, vector<1x32xf32>
    %cst_19 = arith.constant dense<0.000000e+00> : vector<64x128xf32>
    %21 = tpu.matmul %4, %11, %cst_19 {dimension_numbers = #tpu.dot_dimension_numbers<[1], [0], [0], [1], [0, 0, 1, 1], [], []>} : vector<64x8xf32>, vector<8x128xf32>, vector<64x128xf32> -> vector<64x128xf32>
    %cst_20 = arith.constant dense<0.000000e+00> : vector<64x128xf32>
    %22 = tpu.matmul %7, %12, %cst_20 {dimension_numbers = #tpu.dot_dimension_numbers<[1], [0], [0], [1], [0, 0, 1, 1], [], []>} : vector<64x8xf32>, vector<8x128xf32>, vector<64x128xf32> -> vector<64x128xf32>
    %23 = arith.addf %21, %22 : vector<64x128xf32>
    %24 = vector.broadcast %13 : vector<1x128xf32> to vector<64x128xf32>
    %25 = arith.addf %23, %24 : vector<64x128xf32>
    %cst_21 = arith.constant 0.000000e+00 : f32
    %26 = vector.broadcast %cst_21 : f32 to vector<64x128xf32>
    %27 = arith.maximumf %25, %26 : vector<64x128xf32>
    %cst_22 = arith.constant dense<0.000000e+00> : vector<64x64xf32>
    %28 = tpu.matmul %27, %14, %cst_22 {dimension_numbers = #tpu.dot_dimension_numbers<[1], [0], [0], [1], [0, 0, 1, 1], [], []>} : vector<64x128xf32>, vector<128x64xf32>, vector<64x64xf32> -> vector<64x64xf32>
    %29 = vector.broadcast %16 : vector<1x64xf32> to vector<64x64xf32>
    %30 = arith.addf %28, %29 : vector<64x64xf32>
    %cst_23 = arith.constant 0.000000e+00 : f32
    %31 = vector.broadcast %cst_23 : f32 to vector<64x64xf32>
    %32 = arith.maximumf %30, %31 : vector<64x64xf32>
    %cst_24 = arith.constant dense<0.000000e+00> : vector<64x64xf32>
    %33 = tpu.matmul %10, %15, %cst_24 {dimension_numbers = #tpu.dot_dimension_numbers<[1], [0], [0], [1], [0, 0, 1, 1], [], []>} : vector<64x8xf32>, vector<8x64xf32>, vector<64x64xf32> -> vector<64x64xf32>
    %34 = arith.mulf %32, %33 : vector<64x64xf32>
    %cst_25 = arith.constant dense<0.000000e+00> : vector<64x32xf32>
    %35 = tpu.matmul %34, %17, %cst_25 {dimension_numbers = #tpu.dot_dimension_numbers<[1], [0], [0], [1], [0, 0, 1, 1], [], []>} : vector<64x64xf32>, vector<64x32xf32>, vector<64x32xf32> -> vector<64x32xf32>
    %36 = vector.broadcast %19 : vector<1x32xf32> to vector<64x32xf32>
    %37 = arith.addf %35, %36 : vector<64x32xf32>
    %cst_26 = arith.constant 0.000000e+00 : f32
    %38 = vector.broadcast %cst_26 : f32 to vector<64x32xf32>
    %39 = arith.maximumf %37, %38 : vector<64x32xf32>
    %c0_27 = arith.constant 0 : index
    %c0_28 = arith.constant 0 : index
    %40 = vector.load %arg2[%c0_27, %c0_28] : memref<64x16xf32, #tpu.memory_space<vmem>>, vector<64x16xf32>
    %cst_29 = arith.constant dense<0.000000e+00> : vector<64x32xf32>
    %41 = tpu.matmul %40, %18, %cst_29 {dimension_numbers = #tpu.dot_dimension_numbers<[1], [0], [0], [1], [0, 0, 1, 1], [], []>} : vector<64x16xf32>, vector<16x32xf32>, vector<64x32xf32> -> vector<64x32xf32>
    %42 = arith.addf %39, %41 : vector<64x32xf32>
    %43 = vector.broadcast %20 : vector<1x32xf32> to vector<64x32xf32>
    %44 = arith.addf %42, %43 : vector<64x32xf32>
    %c0_30 = arith.constant 0 : index
    %c0_31 = arith.constant 0 : index
    %45 = vector.load %arg6[%c0_30, %c0_31] : memref<64x32xf32, #tpu.memory_space<vmem>>, vector<64x32xf32>
    tpu.vector_store %arg6[%c0_30, %c0_31], %44 {strides = array<i32>} : memref<64x32xf32, #tpu.memory_space<vmem>>, vector<64x32xf32>,
    return
  }
}

</mosaic_0001>

<llo_original>
// kernel: wlappe_forward.1
$region0: #{wlappe_forward.1}
  #allocation0 [shape = 'u32[]', space=smem, size = 0x4, offset = 0x4, fixed_abs, tag = 'smem constant byte address 0x4 - core index']
  #allocation1 [shape = 'u32[72,128]{1,0:T(1,128)}', space=vmem, size = 0x9000, scoped, tag = 'internal scratch']
  %s0 = inlined_call_operand.vmem [shape: f32[64,8], index: 0, kind: input, shape index: {}]
  %s1 = inlined_call_operand.vmem [shape: f32[64,8], index: 1, kind: input, shape index: {}]
  %s2 = inlined_call_operand.vmem [shape: f32[64,16], index: 2, kind: input, shape index: {}]
  %s3 = inlined_call_operand.vmem [shape: f32[24,128], index: 3, kind: input, shape index: {}]
  %s4 = inlined_call_operand.vmem [shape: f32[144,64], index: 4, kind: input, shape index: {}]
  %s5 = inlined_call_operand.vmem [shape: f32[96,32], index: 5, kind: input, shape index: {}]
  %s6 = inlined_call_operand.vmem [shape: f32[64,32], index: 6, kind: output, shape index: {}]
  %s7 = sld [smem:[#allocation0]]
  $region34: #{wlappe_forward.1} parent=0
    _
  %s9 = ssub.s32 1, %s7
  %s10 = scalar_select 0, %s9, %s7
  // Predicated region
  $region2: #{wlappe_forward.1} parent=0 // pred_check
    _
  $region3: #{wlappe_forward.1} parent=0 // pred_check_branch
    %12 = sbr.rel (0) target = $region5
  $region4: #{wlappe_forward.1} parent=0 // pred_region
    _
  $region5: #{wlappe_forward.1} parent=0 // pred_fallthru
    _
  // Predicated region
  $region6: #{wlappe_forward.1} parent=0 // pred_check
    _
  $region7: #{wlappe_forward.1} parent=0 // pred_check_branch
    %14 = sbr.rel (0) target = $region9
  $region8: #{wlappe_forward.1} parent=0 // pred_region
    _
  $region9: #{wlappe_forward.1} parent=0 // pred_fallthru
    _
  // Predicated region
  $region10: #{wlappe_forward.1} parent=0 // pred_check
    _
  $region11: #{wlappe_forward.1} parent=0 // pred_check_branch
    %16 = sbr.rel (0) target = $region13
  $region12: #{wlappe_forward.1} parent=0 // pred_region
    _
  $region13: #{wlappe_forward.1} parent=0 // pred_fallthru
    _
  // Predicated region
  $region14: #{wlappe_forward.1} parent=0 // pred_check
    _
  $region15: #{wlappe_forward.1} parent=0 // pred_check_branch
    %18 = sbr.rel (0) target = $region17
  $region16: #{wlappe_forward.1} parent=0 // pred_region
    _
  $region17: #{wlappe_forward.1} parent=0 // pred_fallthru
    _
  // Predicated region
  $region18: #{wlappe_forward.1} parent=0 // pred_check
    _
  $region19: #{wlappe_forward.1} parent=0 // pred_check_branch
    %20 = sbr.rel (0) target = $region21
  $region20: #{wlappe_forward.1} parent=0 // pred_region
    _
  $region21: #{wlappe_forward.1} parent=0 // pred_fallthru
    _
  // Predicated region
  $region22: #{wlappe_forward.1} parent=0 // pred_check
    _
  $region23: #{wlappe_forward.1} parent=0 // pred_check_branch
    %22 = sbr.rel (0) target = $region25
  $region24: #{wlappe_forward.1} parent=0 // pred_region
    _
  $region25: #{wlappe_forward.1} parent=0 // pred_fallthru
    _
  %v23 = vld [vmem:[%s0] sm:$0xff]
  %v24 = vld [vmem:[%s0 + $0x8] sm:$0xff]
  %v25 = vld [vmem:[%s0 + $0x10] sm:$0xff]
  %v26 = vld [vmem:[%s0 + $0x18] sm:$0xff]
  %v27 = vld [vmem:[%s0 + $0x20] sm:$0xff]
  %v28 = vld [vmem:[%s0 + $0x28] sm:$0xff]
  %v29 = vld [vmem:[%s0 + $0x30] sm:$0xff]
  %v30 = vld [vmem:[%s0 + $0x38] sm:$0xff]
  %v31 = vld [vmem:[%s1] sm:$0xff]
  %v32 = vld [vmem:[%s1 + $0x8] sm:$0xff]
  %v33 = vld [vmem:[%s1 + $0x10] sm:$0xff]
  %v34 = vld [vmem:[%s1 + $0x18] sm:$0xff]
  %v35 = vld [vmem:[%s1 + $0x20] sm:$0xff]
  %v36 = vld [vmem:[%s1 + $0x28] sm:$0xff]
  %v37 = vld [vmem:[%s1 + $0x30] sm:$0xff]
  %v38 = vld [vmem:[%s1 + $0x38] sm:$0xff]
  %vm39 = vcmp.ne.f32.partialorder %v23, %v23
  %vm40 = vcmp.ne.f32.partialorder %v24, %v24
  %vm41 = vcmp.ne.f32.partialorder %v25, %v25
  %vm42 = vcmp.ne.f32.partialorder %v26, %v26
  %vm43 = vcmp.ne.f32.partialorder %v27, %v27
  %vm44 = vcmp.ne.f32.partialorder %v28, %v28
  %vm45 = vcmp.ne.f32.partialorder %v29, %v29
  %vm46 = vcmp.ne.f32.partialorder %v30, %v30
  %v47 = vsel %vm39, 0.0, %v23
  %v48 = vsel %vm40, 0.0, %v24
  %v49 = vsel %vm41, 0.0, %v25
  %v50 = vsel %vm42, 0.0, %v26
  %v51 = vsel %vm43, 0.0, %v27
  %v52 = vsel %vm44, 0.0, %v28
  %v53 = vsel %vm45, 0.0, %v29
  %v54 = vsel %vm46, 0.0, %v30
  %vm55 = vcmp.ne.f32.partialorder %v31, %v31
  %vm56 = vcmp.ne.f32.partialorder %v32, %v32
  %vm57 = vcmp.ne.f32.partialorder %v33, %v33
  %vm58 = vcmp.ne.f32.partialorder %v34, %v34
  %vm59 = vcmp.ne.f32.partialorder %v35, %v35
  %vm60 = vcmp.ne.f32.partialorder %v36, %v36
  %vm61 = vcmp.ne.f32.partialorder %v37, %v37
  %vm62 = vcmp.ne.f32.partialorder %v38, %v38
  %v63 = vsel %vm55, 0.0, %v31
  %v64 = vsel %vm56, 0.0, %v32
  %v65 = vsel %vm57, 0.0, %v33
  %v66 = vsel %vm58, 0.0, %v34
  %v67 = vsel %vm59, 0.0, %v35
  %v68 = vsel %vm60, 0.0, %v36
  %v69 = vsel %vm61, 0.0, %v37
  %v70 = vsel %vm62, 0.0, %v38
  %v71 = vsel %vm39, 0.0, 1.0
  %v72 = vsel %vm40, 0.0, 1.0
  %v73 = vsel %vm41, 0.0, 1.0
  %v74 = vsel %vm42, 0.0, 1.0
  %v75 = vsel %vm43, 0.0, 1.0
  %v76 = vsel %vm44, 0.0, 1.0
  %v77 = vsel %vm45, 0.0, 1.0
  %v78 = vsel %vm46, 0.0, 1.0
  %v79 = vld [vmem:[%s3] sm:$0xff]
  %v80 = vld [vmem:[%s3 + $0x8] sm:$0xff]
  %v81 = vld [vmem:[%s3 + $0x10] sm:$0x1]
  %v82 = vld [vmem:[%s4] sm:$0xff]
  %v83 = vld [vmem:[%s4 + $0x8] sm:$0xff]
  %v84 = vld [vmem:[%s4 + $0x10] sm:$0xff]
  %v85 = vld [vmem:[%s4 + $0x18] sm:$0xff]
  %v86 = vld [vmem:[%s4 + $0x20] sm:$0xff]
  %v87 = vld [vmem:[%s4 + $0x28] sm:$0xff]
  %v88 = vld [vmem:[%s4 + $0x30] sm:$0xff]
  %v89 = vld [vmem:[%s4 + $0x38] sm:$0xff]
  %v90 = vld [vmem:[%s4 + $0x40] sm:$0xff]
  %v91 = vld [vmem:[%s4 + $0x48] sm:$0xff]
  %v92 = vld [vmem:[%s4 + $0x50] sm:$0xff]
  %v93 = vld [vmem:[%s4 + $0x58] sm:$0xff]
  %v94 = vld [vmem:[%s4 + $0x60] sm:$0xff]
  %v95 = vld [vmem:[%s4 + $0x68] sm:$0xff]
  %v96 = vld [vmem:[%s4 + $0x70] sm:$0xff]
  %v97 = vld [vmem:[%s4 + $0x78] sm:$0xff]
  %v98 = vld [vmem:[%s4 + $0x80] sm:$0xff]
  %v99 = vld [vmem:[%s4 + $0x88] sm:$0x1]
  %v100 = vld [vmem:[%s5] sm:$0xff]
  %v101 = vld [vmem:[%s5 + $0x8] sm:$0xff]
  %v102 = vld [vmem:[%s5 + $0x10] sm:$0xff]
  %v103 = vld [vmem:[%s5 + $0x18] sm:$0xff]
  %v104 = vld [vmem:[%s5 + $0x20] sm:$0xff]
  %v105 = vld [vmem:[%s5 + $0x28] sm:$0xff]
  %v106 = vld [vmem:[%s5 + $0x30] sm:$0xff]
  %v107 = vld [vmem:[%s5 + $0x38] sm:$0xff]
  %v108 = vld [vmem:[%s5 + $0x40] sm:$0xff]
  %v109 = vld [vmem:[%s5 + $0x48] sm:$0xff]
  %v110 = vld [vmem:[%s5 + $0x50] sm:$0x1]
  %v111 = vld [vmem:[%s5 + $0x58] sm:$0x1]
  %vm112 = vcmask 64512
  %v114 = vsel %vm112, %v63, 0
  %v117 = vsel %vm112, %v64, 0
  %v120 = vsel %vm112, %v65, 0
  %v123 = vsel %vm112, %v66, 0
  %v126 = vsel %vm112, %v67, 0
  %v129 = vsel %vm112, %v68, 0
  %v132 = vsel %vm112, %v69, 0
  %v135 = vsel %vm112, %v70, 0
  %137 = vmatpush.msra.mxu0 0.0
  %138 = vmatpush.msra.mxu0 0.0
  %139 = vmatpush.msra.mxu0 0.0
  %140 = vmatpush.msra.mxu0 0.0
  %141 = vmatpush.msra.mxu0 0.0
  %142 = vmatpush.msra.mxu0 0.0
  %143 = vmatpush.msra.mxu0 0.0
  %144 = vmatpush.msra.mxu0 0.0
  %145 = vmatpush.msra.mxu0 0.0
  %146 = vmatpush.msra.mxu0 0.0
  %147 = vmatpush.msra.mxu0 0.0
  %148 = vmatpush.msra.mxu0 0.0
  %149 = vmatpush.msra.mxu0 0.0
  %150 = vmatpush.msra.mxu0 0.0
  %151 = vmatpush.msra.mxu0 0.0
  %152 = vmatpush.msra.mxu0 %v80
  %153 = vmatmul.f32.gmra.mxu0 %v114
  %v154 = vpop.f32.mrf.mxu0
  %v155 = vadd.f32 0.0, %v154
  %156 = vmatmul.f32.gmra.mxu0 %v117
  %v157 = vpop.f32.mrf.mxu0
  %v158 = vadd.f32 0.0, %v157
  %159 = vmatmul.f32.gmra.mxu0 %v120
  %v160 = vpop.f32.mrf.mxu0
  %v161 = vadd.f32 0.0, %v160
  %162 = vmatmul.f32.gmra.mxu0 %v123
  %v163 = vpop.f32.mrf.mxu0
  %v164 = vadd.f32 0.0, %v163
  %165 = vmatmul.f32.gmra.mxu0 %v126
  %v166 = vpop.f32.mrf.mxu0
  %v167 = vadd.f32 0.0, %v166
  %168 = vmatmul.f32.gmra.mxu0 %v129
  %v169 = vpop.f32.mrf.mxu0
  %v170 = vadd.f32 0.0, %v169
  %171 = vmatmul.f32.gmra.mxu0 %v132
  %v172 = vpop.f32.mrf.mxu0
  %v173 = vadd.f32 0.0, %v172
  %174 = vmatmul.f32.gmra.mxu0 %v135
  %v175 = vpop.f32.mrf.mxu0
  %v176 = vadd.f32 0.0, %v175
  %177 = vdwg.mxu0
  %v179 = vsel %vm112, %v47, 0
  %v182 = vsel %vm112, %v48, 0
  %v185 = vsel %vm112, %v49, 0
  %v188 = vsel %vm112, %v50, 0
  %v191 = vsel %vm112, %v51, 0
  %v194 = vsel %vm112, %v52, 0
  %v197 = vsel %vm112, %v53, 0
  %v200 = vsel %vm112, %v54, 0
  %202 = vmatpush.msra.mxu0 0.0
  %203 = vmatpush.msra.mxu0 0.0
  %204 = vmatpush.msra.mxu0 0.0
  %205 = vmatpush.msra.mxu0 0.0
  %206 = vmatpush.msra.mxu0 0.0
  %207 = vmatpush.msra.mxu0 0.0
  %208 = vmatpush.msra.mxu0 0.0
  %209 = vmatpush.msra.mxu0 0.0
  %210 = vmatpush.msra.mxu0 0.0
  %211 = vmatpush.msra.mxu0 0.0
  %212 = vmatpush.msra.mxu0 0.0
  %213 = vmatpush.msra.mxu0 0.0
  %214 = vmatpush.msra.mxu0 0.0
  %215 = vmatpush.msra.mxu0 0.0
  %216 = vmatpush.msra.mxu0 0.0
  %217 = vmatpush.msra.mxu0 %v79
  %218 = vmatmul.f32.gmra.mxu0 %v179
  %v219 = vpop.f32.mrf.mxu0
  %v220 = vadd.f32 %v155, %v219
  %221 = vmatmul.f32.gmra.mxu0 %v182
  %v222 = vpop.f32.mrf.mxu0
  %v223 = vadd.f32 %v158, %v222
  %224 = vmatmul.f32.gmra.mxu0 %v185
  %v225 = vpop.f32.mrf.mxu0
  %v226 = vadd.f32 %v161, %v225
  %227 = vmatmul.f32.gmra.mxu0 %v188
  %v228 = vpop.f32.mrf.mxu0
  %v229 = vadd.f32 %v164, %v228
  %230 = vmatmul.f32.gmra.mxu0 %v191
  %v231 = vpop.f32.mrf.mxu0
  %v232 = vadd.f32 %v167, %v231
  %233 = vmatmul.f32.gmra.mxu0 %v194
  %v234 = vpop.f32.mrf.mxu0
  %v235 = vadd.f32 %v170, %v234
  %236 = vmatmul.f32.gmra.mxu0 %v197
  %v237 = vpop.f32.mrf.mxu0
  %v238 = vadd.f32 %v173, %v237
  %239 = vmatmul.f32.gmra.mxu0 %v200
  %v240 = vpop.f32.mrf.mxu0
  %v241 = vadd.f32 %v176, %v240
  %242 = vdwg.mxu0
  %v243 = vperm.slane %v81, 0
  %v244 = vadd.f32 %v220, %v243
  %v245 = vadd.f32 %v223, %v243
  %v246 = vadd.f32 %v226, %v243
  %v247 = vadd.f32 %v229, %v243
  %v248 = vadd.f32 %v232, %v243
  %v249 = vadd.f32 %v235, %v243
  %v250 = vadd.f32 %v238, %v243
  %v251 = vadd.f32 %v241, %v243
  %v252 = vmax.f32 %v244, 0.0
  %v253 = vmax.f32 %v245, 0.0
  %v254 = vmax.f32 %v246, 0.0
  %v255 = vmax.f32 %v247, 0.0
  %v256 = vmax.f32 %v248, 0.0
  %v257 = vmax.f32 %v249, 0.0
  %v258 = vmax.f32 %v250, 0.0
  %v259 = vmax.f32 %v251, 0.0
  %v260 = vperm.slane %v99, 0
  %261 = vmatpush.msra.mxu0 %v97
  %262 = vmatpush.msra.mxu0 %v96
  %263 = vmatpush.msra.mxu0 %v95
  %264 = vmatpush.msra.mxu0 %v94
  %265 = vmatpush.msra.mxu0 %v93
  %266 = vmatpush.msra.mxu0 %v92
  %267 = vmatpush.msra.mxu0 %v91
  %268 = vmatpush.msra.mxu0 %v90
  %269 = vmatpush.msra.mxu0 %v89
  %270 = vmatpush.msra.mxu0 %v88
  %271 = vmatpush.msra.mxu0 %v87
  %272 = vmatpush.msra.mxu0 %v86
  %273 = vmatpush.msra.mxu0 %v85
  %274 = vmatpush.msra.mxu0 %v84
  %275 = vmatpush.msra.mxu0 %v83
  %276 = vmatpush.msra.mxu0 %v82
  %277 = vmatmul.f32.gmra.mxu0 %v252
  %v278 = vpop.f32.mrf.mxu0
  %v279 = vadd.f32 %v260, %v278
  %280 = vmatmul.f32.gmra.mxu0 %v253
  %v281 = vpop.f32.mrf.mxu0
  %v282 = vadd.f32 %v260, %v281
  %283 = vmatmul.f32.gmra.mxu0 %v254
  %v284 = vpop.f32.mrf.mxu0
  %v285 = vadd.f32 %v260, %v284
  %286 = vmatmul.f32.gmra.mxu0 %v255
  %v287 = vpop.f32.mrf.mxu0
  %v288 = vadd.f32 %v260, %v287
  %289 = vmatmul.f32.gmra.mxu0 %v256
  %v290 = vpop.f32.mrf.mxu0
  %v291 = vadd.f32 %v260, %v290
  %292 = vmatmul.f32.gmra.mxu0 %v257
  %v293 = vpop.f32.mrf.mxu0
  %v294 = vadd.f32 %v260, %v293
  %295 = vmatmul.f32.gmra.mxu0 %v258
  %v296 = vpop.f32.mrf.mxu0
  %v297 = vadd.f32 %v260, %v296
  %298 = vmatmul.f32.gmra.mxu0 %v259
  %v299 = vpop.f32.mrf.mxu0
  %v300 = vadd.f32 %v260, %v299
  %301 = vdwg.mxu0
  %v302 = vmax.f32 %v279, 0.0
  %v303 = vmax.f32 %v282, 0.0
  %v304 = vmax.f32 %v285, 0.0
  %v305 = vmax.f32 %v288, 0.0
  %v306 = vmax.f32 %v291, 0.0
  %v307 = vmax.f32 %v294, 0.0
  %v308 = vmax.f32 %v297, 0.0
  %v309 = vmax.f32 %v300, 0.0
  %v311 = vsel %vm112, %v71, 0
  %v314 = vsel %vm112, %v72, 0
  %v317 = vsel %vm112, %v73, 0
  %v320 = vsel %vm112, %v74, 0
  %v323 = vsel %vm112, %v75, 0
  %v326 = vsel %vm112, %v76, 0
  %v329 = vsel %vm112, %v77, 0
  %v332 = vsel %vm112, %v78, 0
  %334 = vmatpush.msra.mxu0 0.0
  %335 = vmatpush.msra.mxu0 0.0
  %336 = vmatpush.msra.mxu0 0.0
  %337 = vmatpush.msra.mxu0 0.0
  %338 = vmatpush.msra.mxu0 0.0
  %339 = vmatpush.msra.mxu0 0.0
  %340 = vmatpush.msra.mxu0 0.0
  %341 = vmatpush.msra.mxu0 0.0
  %342 = vmatpush.msra.mxu0 0.0
  %343 = vmatpush.msra.mxu0 0.0
  %344 = vmatpush.msra.mxu0 0.0
  %345 = vmatpush.msra.mxu0 0.0
  %346 = vmatpush.msra.mxu0 0.0
  %347 = vmatpush.msra.mxu0 0.0
  %348 = vmatpush.msra.mxu0 0.0
  %349 = vmatpush.msra.mxu0 %v98
  %350 = vmatmul.f32.gmra.mxu0 %v311
  %v351 = vpop.f32.mrf.mxu0
  %v352 = vadd.f32 0.0, %v351
  %353 = vmatmul.f32.gmra.mxu0 %v314
  %v354 = vpop.f32.mrf.mxu0
  %v355 = vadd.f32 0.0, %v354
  %356 = vmatmul.f32.gmra.mxu0 %v317
  %v357 = vpop.f32.mrf.mxu0
  %v358 = vadd.f32 0.0, %v357
  %359 = vmatmul.f32.gmra.mxu0 %v320
  %v360 = vpop.f32.mrf.mxu0
  %v361 = vadd.f32 0.0, %v360
  %362 = vmatmul.f32.gmra.mxu0 %v323
  %v363 = vpop.f32.mrf.mxu0
  %v364 = vadd.f32 0.0, %v363
  %365 = vmatmul.f32.gmra.mxu0 %v326
  %v366 = vpop.f32.mrf.mxu0
  %v367 = vadd.f32 0.0, %v366
  %368 = vmatmul.f32.gmra.mxu0 %v329
  %v369 = vpop.f32.mrf.mxu0
  %v370 = vadd.f32 0.0, %v369
  %371 = vmatmul.f32.gmra.mxu0 %v332
  %v372 = vpop.f32.mrf.mxu0
  %v373 = vadd.f32 0.0, %v372
  %374 = vdwg.mxu0
  %v375 = vmul.f32 %v302, %v352
  %v376 = vmul.f32 %v303, %v355
  %v377 = vmul.f32 %v304, %v358
  %v378 = vmul.f32 %v305, %v361
  %v379 = vmul.f32 %v306, %v364
  %v380 = vmul.f32 %v307, %v367
  %v381 = vmul.f32 %v308, %v370
  %v382 = vmul.f32 %v309, %v373
  %v383 = vperm.slane %v110, 0
  %vm384 = vcmask 523264
  %v386 = vsel %vm384, %v375, 0
  %v389 = vsel %vm384, %v376, 0
  %v392 = vsel %vm384, %v377, 0
  %v395 = vsel %vm384, %v378, 0
  %v398 = vsel %vm384, %v379, 0
  %v401 = vsel %vm384, %v380, 0
  %v404 = vsel %vm384, %v381, 0
  %v407 = vsel %vm384, %v382, 0
  %409 = vmatpush.msra.mxu0 0.0
  %410 = vmatpush.msra.mxu0 0.0
  %411 = vmatpush.msra.mxu0 0.0
  %412 = vmatpush.msra.mxu0 0.0
  %413 = vmatpush.msra.mxu0 0.0
  %414 = vmatpush.msra.mxu0 0.0
  %415 = vmatpush.msra.mxu0 0.0
  %416 = vmatpush.msra.mxu0 0.0
  %417 = vmatpush.msra.mxu0 %v107
  %418 = vmatpush.msra.mxu0 %v106
  %419 = vmatpush.msra.mxu0 %v105
  %420 = vmatpush.msra.mxu0 %v104
  %421 = vmatpush.msra.mxu0 %v103
  %422 = vmatpush.msra.mxu0 %v102
  %423 = vmatpush.msra.mxu0 %v101
  %424 = vmatpush.msra.mxu0 %v100
  %425 = vmatmul.f32.gmra.mxu0 %v386
  %v426 = vpop.f32.mrf.mxu0
  %v427 = vadd.f32 %v383, %v426
  %428 = vmatmul.f32.gmra.mxu0 %v389
  %v429 = vpop.f32.mrf.mxu0
  %v430 = vadd.f32 %v383, %v429
  %431 = vmatmul.f32.gmra.mxu0 %v392
  %v432 = vpop.f32.mrf.mxu0
  %v433 = vadd.f32 %v383, %v432
  %434 = vmatmul.f32.gmra.mxu0 %v395
  %v435 = vpop.f32.mrf.mxu0
  %v436 = vadd.f32 %v383, %v435
  %437 = vmatmul.f32.gmra.mxu0 %v398
  %v438 = vpop.f32.mrf.mxu0
  %v439 = vadd.f32 %v383, %v438
  %440 = vmatmul.f32.gmra.mxu0 %v401
  %v441 = vpop.f32.mrf.mxu0
  %v442 = vadd.f32 %v383, %v441
  %443 = vmatmul.f32.gmra.mxu0 %v404
  %v444 = vpop.f32.mrf.mxu0
  %v445 = vadd.f32 %v383, %v444
  %446 = vmatmul.f32.gmra.mxu0 %v407
  %v447 = vpop.f32.mrf.mxu0
  %v448 = vadd.f32 %v383, %v447
  %449 = vdwg.mxu0
  %v450 = vmax.f32 %v427, 0.0
  %v451 = vmax.f32 %v430, 0.0
  %v452 = vmax.f32 %v433, 0.0
  %v453 = vmax.f32 %v436, 0.0
  %v454 = vmax.f32 %v439, 0.0
  %v455 = vmax.f32 %v442, 0.0
  %v456 = vmax.f32 %v445, 0.0
  %v457 = vmax.f32 %v448, 0.0
  %v458 = vld [vmem:[%s2] sm:$0xff]
  %v459 = vld [vmem:[%s2 + $0x8] sm:$0xff]
  %v460 = vld [vmem:[%s2 + $0x10] sm:$0xff]
  %v461 = vld [vmem:[%s2 + $0x18] sm:$0xff]
  %v462 = vld [vmem:[%s2 + $0x20] sm:$0xff]
  %v463 = vld [vmem:[%s2 + $0x28] sm:$0xff]
  %v464 = vld [vmem:[%s2 + $0x30] sm:$0xff]
  %v465 = vld [vmem:[%s2 + $0x38] sm:$0xff]
  %vm466 = vcmask 130048
  %v468 = vsel %vm466, %v458, 0
  %v471 = vsel %vm466, %v459, 0
  %v474 = vsel %vm466, %v460, 0
  %v477 = vsel %vm466, %v461, 0
  %v480 = vsel %vm466, %v462, 0
  %v483 = vsel %vm466, %v463, 0
  %v486 = vsel %vm466, %v464, 0
  %v489 = vsel %vm466, %v465, 0
  %491 = vmatpush.msra.mxu0 0.0
  %492 = vmatpush.msra.mxu0 0.0
  %493 = vmatpush.msra.mxu0 0.0
  %494 = vmatpush.msra.mxu0 0.0
  %495 = vmatpush.msra.mxu0 0.0
  %496 = vmatpush.msra.mxu0 0.0
  %497 = vmatpush.msra.mxu0 0.0
  %498 = vmatpush.msra.mxu0 0.0
  %499 = vmatpush.msra.mxu0 0.0
  %500 = vmatpush.msra.mxu0 0.0
  %501 = vmatpush.msra.mxu0 0.0
  %502 = vmatpush.msra.mxu0 0.0
  %503 = vmatpush.msra.mxu0 0.0
  %504 = vmatpush.msra.mxu0 0.0
  %505 = vmatpush.msra.mxu0 %v109
  %506 = vmatpush.msra.mxu0 %v108
  %507 = vmatmul.f32.gmra.mxu0 %v468
  %v508 = vpop.f32.mrf.mxu0
  %v509 = vadd.f32 0.0, %v508
  %510 = vmatmul.f32.gmra.mxu0 %v471
  %v511 = vpop.f32.mrf.mxu0
  %v512 = vadd.f32 0.0, %v511
  %513 = vmatmul.f32.gmra.mxu0 %v474
  %v514 = vpop.f32.mrf.mxu0
  %v515 = vadd.f32 0.0, %v514
  %516 = vmatmul.f32.gmra.mxu0 %v477
  %v517 = vpop.f32.mrf.mxu0
  %v518 = vadd.f32 0.0, %v517
  %519 = vmatmul.f32.gmra.mxu0 %v480
  %v520 = vpop.f32.mrf.mxu0
  %v521 = vadd.f32 0.0, %v520
  %522 = vmatmul.f32.gmra.mxu0 %v483
  %v523 = vpop.f32.mrf.mxu0
  %v524 = vadd.f32 0.0, %v523
  %525 = vmatmul.f32.gmra.mxu0 %v486
  %v526 = vpop.f32.mrf.mxu0
  %v527 = vadd.f32 0.0, %v526
  %528 = vmatmul.f32.gmra.mxu0 %v489
  %v529 = vpop.f32.mrf.mxu0
  %v530 = vadd.f32 0.0, %v529
  %531 = vdwg.mxu0
  %v532 = vadd.f32 %v450, %v509
  %v533 = vadd.f32 %v451, %v512
  %v534 = vadd.f32 %v452, %v515
  %v535 = vadd.f32 %v453, %v518
  %v536 = vadd.f32 %v454, %v521
  %v537 = vadd.f32 %v455, %v524
  %v538 = vadd.f32 %v456, %v527
  %v539 = vadd.f32 %v457, %v530
  %v540 = vperm.slane %v111, 0
  %v541 = vadd.f32 %v532, %v540
  %v542 = vadd.f32 %v533, %v540
  %v543 = vadd.f32 %v534, %v540
  %v544 = vadd.f32 %v535, %v540
  %v545 = vadd.f32 %v536, %v540
  %v546 = vadd.f32 %v537, %v540
  %v547 = vadd.f32 %v538, %v540
  %v548 = vadd.f32 %v539, %v540
  %vm549 = vcmask 261120
  %550 = vst.msk [vmem:[%s6] sm:$0xff] %vm549, %v541
  %551 = vst.msk [vmem:[%s6 + $0x8] sm:$0xff] %vm549, %v542
  %552 = vst.msk [vmem:[%s6 + $0x10] sm:$0xff] %vm549, %v543
  %553 = vst.msk [vmem:[%s6 + $0x18] sm:$0xff] %vm549, %v544
  %554 = vst.msk [vmem:[%s6 + $0x20] sm:$0xff] %vm549, %v545
  %555 = vst.msk [vmem:[%s6 + $0x28] sm:$0xff] %vm549, %v546
  %556 = vst.msk [vmem:[%s6 + $0x30] sm:$0xff] %vm549, %v547
  %557 = vst.msk [vmem:[%s6 + $0x38] sm:$0xff] %vm549, %v548
  // Predicated region
  $region26: #{wlappe_forward.1} parent=0 // pred_check
    _
  $region27: #{wlappe_forward.1} parent=0 // pred_check_branch
    %559 = sbr.rel (0) target = $region29
  $region28: #{wlappe_forward.1} parent=0 // pred_region
    _
  $region29: #{wlappe_forward.1} parent=0 // pred_fallthru
    _
  // Predicated region
  $region30: #{wlappe_forward.1} parent=0 // pred_check
    _
  $region31: #{wlappe_forward.1} parent=0 // pred_check_branch
    %561 = sbr.rel (0) target = $region33
  $region32: #{wlappe_forward.1} parent=0 // pred_region
    _
  $region33: #{wlappe_forward.1} parent=0 // pred_fallthru
    _

</llo_original>
